<compile_context>
chip_gen: v7x
topology: tpu7x:2x2x1
jax: 0.10.0
libtpu: 0.0.40
codegen_flags: <defaults>
</compile_context>

<pallas_src>
import jax
import jax.numpy as jnp
from jax import lax
from jax.experimental import pallas as pl
from jax.experimental.pallas import tpu as pltpu


# ----------------------------------------------------------------------------
# Pallas kernel: StyleGAN-style mapping MLP
#   pixel-norm(z) -> [Linear + LeakyReLU(0.2)] x mapping_layers
# Single invocation, weights fully resident, statically unrolled layer loop.
# ----------------------------------------------------------------------------
def _mapping_kernel(z_ref, w_ref, b_ref, o_ref):
    # Prologue: PixelNorm on the latent input (StyleGAN mapping front-end).
    z = z_ref[...].astype(jnp.float32)
    h = z * lax.rsqrt(jnp.mean(z * z, axis=-1, keepdims=True) + 1e-8)

    num_layers = w_ref.shape[0]                      # static
    for j in range(num_layers):                      # statically unrolled
        w = w_ref[j]                                 # (L, L) bf16, static index
        b = b_ref[pl.ds(j, 1), :]                    # (1, L) f32, static slice
        # bf16 x bf16 -> f32 accumulation: native single-pass MXU path.
        y = jnp.dot(h.astype(jnp.bfloat16), w,
                    preferred_element_type=jnp.float32) + b
        h = jnp.maximum(y, 0.2 * y)                  # LeakyReLU(0.2), f32

    o_ref[...] = h.astype(o_ref.dtype)               # (N, L): lane-dense store


def mapping_forward(z, weights, biases):
    """z: (N, L) f32; weights: (M, L, L) bf16; biases: (M, L) f32
    -> mapped latent (N, L) f32 (style replication done by the caller)."""
    n, l = z.shape
    return pl.pallas_call(
        _mapping_kernel,
        out_shape=jax.ShapeDtypeStruct((n, l), jnp.float32),
        in_specs=[
            pl.BlockSpec(memory_space=pltpu.MemorySpace.VMEM),   # z (resident)
            pl.BlockSpec(memory_space=pltpu.MemorySpace.VMEM),   # weight stack
            pl.BlockSpec(memory_space=pltpu.MemorySpace.VMEM),   # biases
        ],
        out_specs=pl.BlockSpec(memory_space=pltpu.MemorySpace.VMEM),
        compiler_params=pltpu.CompilerParams(
            # Explicit scoped-VMEM limit with headroom on v7x (64 MiB physical).
            vmem_limit_bytes=48 * 1024 * 1024,
        ),
    )(z, weights, biases)


# ----------------------------------------------------------------------------
# Pure-JAX reference (same arithmetic: bf16 operands, f32 accumulation).
# ----------------------------------------------------------------------------
def reference_mapping(z, weights_bf16, biases):
    z = z.astype(jnp.float32)
    h = z * lax.rsqrt(jnp.mean(z * z, axis=-1, keepdims=True) + 1e-8)
    for i in range(weights_bf16.shape[0]):
        y = jnp.dot(h.astype(jnp.bfloat16), weights_bf16[i],
                    preferred_element_type=jnp.float32) + biases[i][None, :]
        h = jnp.maximum(y, 0.2 * y)
    return h


# ----------------------------------------------------------------------------
# Model glue (parameter setup, buffer handling, optional truncation paths).
# ----------------------------------------------------------------------------
class PallasModel:
    def __init__(self, channels=3, mapping_layers=8, latent_size=512,
                 startf=32, maxf=256, layer_count=3, dlatent_avg_beta=None,
                 truncation_psi=None, truncation_cutoff=None,
                 style_mixing_prob=None, model="normal", seed=0):
        self.model = model
        self.out_layer = layer_count - 1
        self.latent_size = latent_size
        self.num_layers = 2 * layer_count
        self.mapping_layers = mapping_layers
        self.dlatent_avg_beta = dlatent_avg_beta
        self.truncation_psi = truncation_psi
        self.truncation_cutoff = truncation_cutoff
        self.style_mixing_prob = style_mixing_prob

        # Deterministic parameter init (lr-equalized-linear style scaling).
        # Weights stored in bf16 (matches the native MXU operand dtype).
        k_w, _ = jax.random.split(jax.random.PRNGKey(seed))
        scale = 1.0 / jnp.sqrt(jnp.float32(latent_size))
        self.map_w = (jax.random.normal(
            k_w, (mapping_layers, latent_size, latent_size), jnp.float32)
            * scale).astype(jnp.bfloat16)
        self.map_b = jnp.zeros((mapping_layers, latent_size), jnp.float32)

        # DLatent buffer: zeros(num_layers, dlatent_size), float32.
        self.dlatent_avg = jnp.zeros((self.num_layers, latent_size), jnp.float32)

    def _mapping(self, z):
        # Pallas kernel produces (N, L); replicate to (N, num_layers, L) in XLA
        # (free broadcast; avoids sublane-misaligned masked stores in-kernel).
        h = mapping_forward(z.astype(jnp.float32), self.map_w, self.map_b)
        return jnp.broadcast_to(h[:, None, :],
                                (h.shape[0], self.num_layers, h.shape[1]))

    def generate(self, lod, remove_blob=True, z=None, count=32):
        if z is None:
            z = jax.random.normal(jax.random.PRNGKey(1),
                                  (count, self.latent_size), jnp.float32)
        styles = self._mapping(z)                            # (N, num_layers, L)

        if self.dlatent_avg_beta is not None:
            # NOTE: mutating Python-object state; do not jit this path.
            batch_avg = jnp.mean(styles, axis=0)             # (num_layers, L)
            t = 1.0 - self.dlatent_avg_beta
            self.dlatent_avg = self.dlatent_avg + t * (batch_avg - self.dlatent_avg)

        # TODO(synk): style_mixing_prob path uses host-side random.random() /
        # randint and a second mapping pass; omitted (defaults to None).

        if self.truncation_psi is not None:
            layer_idx = jnp.arange(self.num_layers)[None, :, None]
            ones = jnp.ones(layer_idx.shape, jnp.float32)
            coefs = jnp.where(layer_idx < self.truncation_cutoff,
                              self.truncation_psi * ones, ones)
            styles = self.dlatent_avg[None] + coefs * (styles - self.dlatent_avg[None])

        # TODO(synk): Generator class source not provided in the reference;
        # synthesis network is not implemented — return the style tensor.
        rec = styles
        return rec

    def forward(self, x, lod, blend_factor, d_train):
        # Faithful to the PyTorch forward's positional argument routing:
        # generate(lod=x, remove_blob=lod, z=blend_factor, count=d_train)
        return self.generate(x, lod, blend_factor, d_train)


if __name__ == "__main__":
    # Small shapes: latent_size=128 (lane-dense), mapping_layers=8,
    # layer_count=3, batch=8.
    latent_size = 128
    batch = 8
    mapping_layers = 8
    layer_count = 3

    model = PallasModel(channels=3, mapping_layers=mapping_layers,
                        latent_size=latent_size, layer_count=layer_count, seed=0)

    z = jax.random.normal(jax.random.PRNGKey(0), (batch, latent_size), jnp.float32)

    # forward(x, lod, blend_factor, d_train): x plays the role of `lod`,
    # blend_factor plays the role of `z`, d_train plays the role of `count`.
    out = model.forward(x=0, lod=True, blend_factor=z, d_train=batch)
    out = jax.block_until_ready(out)

    ref_h = reference_mapping(z, model.map_w, model.map_b)
    ref = jnp.broadcast_to(ref_h[:, None, :],
                           (batch, 2 * layer_count, latent_size))
    ref = jax.block_until_ready(ref)

    assert out.shape == (batch, 2 * layer_count, latent_size), out.shape
    assert out.dtype == jnp.float32
    assert bool(jnp.all(jnp.isfinite(out)))
    assert bool(jnp.allclose(out, ref, rtol=1e-2, atol=1e-2)), (
        float(jnp.max(jnp.abs(out - ref))))
    print("KERNEL_OK")
</pallas_src>

<mosaic_0001>
module attributes {stable_mosaic.version = 11 : i64} {
  func.func @_mapping_kernel(%arg0: memref<8x128xf32, #tpu.memory_space<vmem>>, %arg1: memref<8x128x128xbf16, #tpu.memory_space<vmem>>, %arg2: memref<8x128xf32, #tpu.memory_space<vmem>>, %arg3: memref<8x128xf32, #tpu.memory_space<vmem>>) attributes {dimension_semantics = [], scalar_prefetch = 0 : i64, scratch_operands = 0 : i64, tpu.core_type = #tpu.core_type<tc>} {
    %c0 = arith.constant 0 : index
    %c0_0 = arith.constant 0 : index
    %0 = vector.load %arg0[%c0, %c0_0] : memref<8x128xf32, #tpu.memory_space<vmem>>, vector<8x128xf32>
    %1 = arith.mulf %0, %0 : vector<8x128xf32>
    %cst = arith.constant dense<0.000000e+00> : vector<8xf32>
    %2 = vector.multi_reduction <add>, %1, %cst [1] : vector<8x128xf32> to vector<8xf32>
    %3 = vector.shape_cast %2 : vector<8xf32> to vector<8x1xf32>
    %cst_1 = arith.constant 1.280000e+02 : f32
    %4 = vector.broadcast %cst_1 : f32 to vector<8x1xf32>
    %5 = arith.divf %3, %4 : vector<8x1xf32>
    %cst_2 = arith.constant 9.99999993E-9 : f32
    %6 = vector.broadcast %cst_2 : f32 to vector<8x1xf32>
    %7 = arith.addf %5, %6 : vector<8x1xf32>
    %8 = math.rsqrt %7 : vector<8x1xf32>
    %9 = vector.broadcast %8 : vector<8x1xf32> to vector<8x128xf32>
    %10 = arith.mulf %0, %9 : vector<8x128xf32>
    %c0_3 = arith.constant 0 : index
    %c0_4 = arith.constant 0 : index
    %c0_5 = arith.constant 0 : index
    %11 = vector.load %arg1[%c0_3, %c0_4, %c0_5] : memref<8x128x128xbf16, #tpu.memory_space<vmem>>, vector<1x128x128xbf16>
    %12 = vector.shape_cast %11 : vector<1x128x128xbf16> to vector<128x128xbf16>
    %c0_6 = arith.constant 0 : index
    %c0_7 = arith.constant 0 : index
    %13 = vector.load %arg2[%c0_6, %c0_7] : memref<8x128xf32, #tpu.memory_space<vmem>>, vector<1x128xf32>
    %14 = arith.truncf %10 : vector<8x128xf32> to vector<8x128xbf16>
    %cst_8 = arith.constant dense<0.000000e+00> : vector<8x128xf32>
    %15 = tpu.matmul %14, %12, %cst_8 {dimension_numbers = #tpu.dot_dimension_numbers<[1], [0], [0], [1], [0, 0, 1, 1], [], []>} : vector<8x128xbf16>, vector<128x128xbf16>, vector<8x128xf32> -> vector<8x128xf32>
    %16 = vector.broadcast %13 : vector<1x128xf32> to vector<8x128xf32>
    %17 = arith.addf %15, %16 : vector<8x128xf32>
    %cst_9 = arith.constant 2.000000e-01 : f32
    %18 = vector.broadcast %cst_9 : f32 to vector<8x128xf32>
    %19 = arith.mulf %18, %17 : vector<8x128xf32>
    %20 = arith.maximumf %17, %19 : vector<8x128xf32>
    %c1 = arith.constant 1 : index
    %c0_10 = arith.constant 0 : index
    %c0_11 = arith.constant 0 : index
    %21 = vector.load %arg1[%c1, %c0_10, %c0_11] : memref<8x128x128xbf16, #tpu.memory_space<vmem>>, vector<1x128x128xbf16>
    %22 = vector.shape_cast %21 : vector<1x128x128xbf16> to vector<128x128xbf16>
    %c1_12 = arith.constant 1 : index
    %c0_13 = arith.constant 0 : index
    %23 = vector.load %arg2[%c1_12, %c0_13] : memref<8x128xf32, #tpu.memory_space<vmem>>, vector<1x128xf32>
    %24 = arith.truncf %20 : vector<8x128xf32> to vector<8x128xbf16>
    %cst_14 = arith.constant dense<0.000000e+00> : vector<8x128xf32>
    %25 = tpu.matmul %24, %22, %cst_14 {dimension_numbers = #tpu.dot_dimension_numbers<[1], [0], [0], [1], [0, 0, 1, 1], [], []>} : vector<8x128xbf16>, vector<128x128xbf16>, vector<8x128xf32> -> vector<8x128xf32>
    %26 = vector.broadcast %23 : vector<1x128xf32> to vector<8x128xf32>
    %27 = arith.addf %25, %26 : vector<8x128xf32>
    %cst_15 = arith.constant 2.000000e-01 : f32
    %28 = vector.broadcast %cst_15 : f32 to vector<8x128xf32>
    %29 = arith.mulf %28, %27 : vector<8x128xf32>
    %30 = arith.maximumf %27, %29 : vector<8x128xf32>
    %c2 = arith.constant 2 : index
    %c0_16 = arith.constant 0 : index
    %c0_17 = arith.constant 0 : index
    %31 = vector.load %arg1[%c2, %c0_16, %c0_17] : memref<8x128x128xbf16, #tpu.memory_space<vmem>>, vector<1x128x128xbf16>
    %32 = vector.shape_cast %31 : vector<1x128x128xbf16> to vector<128x128xbf16>
    %c2_18 = arith.constant 2 : index
    %c0_19 = arith.constant 0 : index
    %33 = vector.load %arg2[%c2_18, %c0_19] : memref<8x128xf32, #tpu.memory_space<vmem>>, vector<1x128xf32>
    %34 = arith.truncf %30 : vector<8x128xf32> to vector<8x128xbf16>
    %cst_20 = arith.constant dense<0.000000e+00> : vector<8x128xf32>
    %35 = tpu.matmul %34, %32, %cst_20 {dimension_numbers = #tpu.dot_dimension_numbers<[1], [0], [0], [1], [0, 0, 1, 1], [], []>} : vector<8x128xbf16>, vector<128x128xbf16>, vector<8x128xf32> -> vector<8x128xf32>
    %36 = vector.broadcast %33 : vector<1x128xf32> to vector<8x128xf32>
    %37 = arith.addf %35, %36 : vector<8x128xf32>
    %cst_21 = arith.constant 2.000000e-01 : f32
    %38 = vector.broadcast %cst_21 : f32 to vector<8x128xf32>
    %39 = arith.mulf %38, %37 : vector<8x128xf32>
    %40 = arith.maximumf %37, %39 : vector<8x128xf32>
    %c3 = arith.constant 3 : index
    %c0_22 = arith.constant 0 : index
    %c0_23 = arith.constant 0 : index
    %41 = vector.load %arg1[%c3, %c0_22, %c0_23] : memref<8x128x128xbf16, #tpu.memory_space<vmem>>, vector<1x128x128xbf16>
    %42 = vector.shape_cast %41 : vector<1x128x128xbf16> to vector<128x128xbf16>
    %c3_24 = arith.constant 3 : index
    %c0_25 = arith.constant 0 : index
    %43 = vector.load %arg2[%c3_24, %c0_25] : memref<8x128xf32, #tpu.memory_space<vmem>>, vector<1x128xf32>
    %44 = arith.truncf %40 : vector<8x128xf32> to vector<8x128xbf16>
    %cst_26 = arith.constant dense<0.000000e+00> : vector<8x128xf32>
    %45 = tpu.matmul %44, %42, %cst_26 {dimension_numbers = #tpu.dot_dimension_numbers<[1], [0], [0], [1], [0, 0, 1, 1], [], []>} : vector<8x128xbf16>, vector<128x128xbf16>, vector<8x128xf32> -> vector<8x128xf32>
    %46 = vector.broadcast %43 : vector<1x128xf32> to vector<8x128xf32>
    %47 = arith.addf %45, %46 : vector<8x128xf32>
    %cst_27 = arith.constant 2.000000e-01 : f32
    %48 = vector.broadcast %cst_27 : f32 to vector<8x128xf32>
    %49 = arith.mulf %48, %47 : vector<8x128xf32>
    %50 = arith.maximumf %47, %49 : vector<8x128xf32>
    %c4 = arith.constant 4 : index
    %c0_28 = arith.constant 0 : index
    %c0_29 = arith.constant 0 : index
    %51 = vector.load %arg1[%c4, %c0_28, %c0_29] : memref<8x128x128xbf16, #tpu.memory_space<vmem>>, vector<1x128x128xbf16>
    %52 = vector.shape_cast %51 : vector<1x128x128xbf16> to vector<128x128xbf16>
    %c4_30 = arith.constant 4 : index
    %c0_31 = arith.constant 0 : index
    %53 = vector.load %arg2[%c4_30, %c0_31] : memref<8x128xf32, #tpu.memory_space<vmem>>, vector<1x128xf32>
    %54 = arith.truncf %50 : vector<8x128xf32> to vector<8x128xbf16>
    %cst_32 = arith.constant dense<0.000000e+00> : vector<8x128xf32>
    %55 = tpu.matmul %54, %52, %cst_32 {dimension_numbers = #tpu.dot_dimension_numbers<[1], [0], [0], [1], [0, 0, 1, 1], [], []>} : vector<8x128xbf16>, vector<128x128xbf16>, vector<8x128xf32> -> vector<8x128xf32>
    %56 = vector.broadcast %53 : vector<1x128xf32> to vector<8x128xf32>
    %57 = arith.addf %55, %56 : vector<8x128xf32>
    %cst_33 = arith.constant 2.000000e-01 : f32
    %58 = vector.broadcast %cst_33 : f32 to vector<8x128xf32>
    %59 = arith.mulf %58, %57 : vector<8x128xf32>
    %60 = arith.maximumf %57, %59 : vector<8x128xf32>
    %c5 = arith.constant 5 : index
    %c0_34 = arith.constant 0 : index
    %c0_35 = arith.constant 0 : index
    %61 = vector.load %arg1[%c5, %c0_34, %c0_35] : memref<8x128x128xbf16, #tpu.memory_space<vmem>>, vector<1x128x128xbf16>
    %62 = vector.shape_cast %61 : vector<1x128x128xbf16> to vector<128x128xbf16>
    %c5_36 = arith.constant 5 : index
    %c0_37 = arith.constant 0 : index
    %63 = vector.load %arg2[%c5_36, %c0_37] : memref<8x128xf32, #tpu.memory_space<vmem>>, vector<1x128xf32>
    %64 = arith.truncf %60 : vector<8x128xf32> to vector<8x128xbf16>
    %cst_38 = arith.constant dense<0.000000e+00> : vector<8x128xf32>
    %65 = tpu.matmul %64, %62, %cst_38 {dimension_numbers = #tpu.dot_dimension_numbers<[1], [0], [0], [1], [0, 0, 1, 1], [], []>} : vector<8x128xbf16>, vector<128x128xbf16>, vector<8x128xf32> -> vector<8x128xf32>
    %66 = vector.broadcast %63 : vector<1x128xf32> to vector<8x128xf32>
    %67 = arith.addf %65, %66 : vector<8x128xf32>
    %cst_39 = arith.constant 2.000000e-01 : f32
    %68 = vector.broadcast %cst_39 : f32 to vector<8x128xf32>
    %69 = arith.mulf %68, %67 : vector<8x128xf32>
    %70 = arith.maximumf %67, %69 : vector<8x128xf32>
    %c6 = arith.constant 6 : index
    %c0_40 = arith.constant 0 : index
    %c0_41 = arith.constant 0 : index
    %71 = vector.load %arg1[%c6, %c0_40, %c0_41] : memref<8x128x128xbf16, #tpu.memory_space<vmem>>, vector<1x128x128xbf16>
    %72 = vector.shape_cast %71 : vector<1x128x128xbf16> to vector<128x128xbf16>
    %c6_42 = arith.constant 6 : index
    %c0_43 = arith.constant 0 : index
    %73 = vector.load %arg2[%c6_42, %c0_43] : memref<8x128xf32, #tpu.memory_space<vmem>>, vector<1x128xf32>
    %74 = arith.truncf %70 : vector<8x128xf32> to vector<8x128xbf16>
    %cst_44 = arith.constant dense<0.000000e+00> : vector<8x128xf32>
    %75 = tpu.matmul %74, %72, %cst_44 {dimension_numbers = #tpu.dot_dimension_numbers<[1], [0], [0], [1], [0, 0, 1, 1], [], []>} : vector<8x128xbf16>, vector<128x128xbf16>, vector<8x128xf32> -> vector<8x128xf32>
    %76 = vector.broadcast %73 : vector<1x128xf32> to vector<8x128xf32>
    %77 = arith.addf %75, %76 : vector<8x128xf32>
    %cst_45 = arith.constant 2.000000e-01 : f32
    %78 = vector.broadcast %cst_45 : f32 to vector<8x128xf32>
    %79 = arith.mulf %78, %77 : vector<8x128xf32>
    %80 = arith.maximumf %77, %79 : vector<8x128xf32>
    %c7 = arith.constant 7 : index
    %c0_46 = arith.constant 0 : index
    %c0_47 = arith.constant 0 : index
    %81 = vector.load %arg1[%c7, %c0_46, %c0_47] : memref<8x128x128xbf16, #tpu.memory_space<vmem>>, vector<1x128x128xbf16>
    %82 = vector.shape_cast %81 : vector<1x128x128xbf16> to vector<128x128xbf16>
    %c7_48 = arith.constant 7 : index
    %c0_49 = arith.constant 0 : index
    %83 = vector.load %arg2[%c7_48, %c0_49] : memref<8x128xf32, #tpu.memory_space<vmem>>, vector<1x128xf32>
    %84 = arith.truncf %80 : vector<8x128xf32> to vector<8x128xbf16>
    %cst_50 = arith.constant dense<0.000000e+00> : vector<8x128xf32>
    %85 = tpu.matmul %84, %82, %cst_50 {dimension_numbers = #tpu.dot_dimension_numbers<[1], [0], [0], [1], [0, 0, 1, 1], [], []>} : vector<8x128xbf16>, vector<128x128xbf16>, vector<8x128xf32> -> vector<8x128xf32>
    %86 = vector.broadcast %83 : vector<1x128xf32> to vector<8x128xf32>
    %87 = arith.addf %85, %86 : vector<8x128xf32>
    %cst_51 = arith.constant 2.000000e-01 : f32
    %88 = vector.broadcast %cst_51 : f32 to vector<8x128xf32>
    %89 = arith.mulf %88, %87 : vector<8x128xf32>
    %90 = arith.maximumf %87, %89 : vector<8x128xf32>
    %c0_52 = arith.constant 0 : index
    %c0_53 = arith.constant 0 : index
    %91 = vector.load %arg3[%c0_52, %c0_53] : memref<8x128xf32, #tpu.memory_space<vmem>>, vector<8x128xf32>
    tpu.vector_store %arg3[%c0_52, %c0_53], %90 {strides = array<i32>} : memref<8x128xf32, #tpu.memory_space<vmem>>, vector<8x128xf32>,
    return
  }
}

</mosaic_0001>

<llo_original>
// kernel: tpu_custom_call.1
$region0: #{tpu_custom_call.1}
  #allocation0 [shape = 'u32[]', space=smem, size = 0x4, offset = 0x4, fixed_abs, tag = 'smem constant byte address 0x4 - core index']
  #allocation1 [shape = 'u32[144,128]{1,0:T(1,128)}', space=vmem, size = 0x12000, scoped, tag = 'internal scratch']
  %s0 = inlined_call_operand.hbm [shape: f32[8,128], index: 0, kind: input, shape index: {}]
  %s1 = inlined_call_operand.hbm [shape: bf16[8,128,128], index: 1, kind: input, shape index: {}]
  %s2 = inlined_call_operand.hbm [shape: f32[8,128], index: 2, kind: input, shape index: {}]
  %s3 = inlined_call_operand.hbm [shape: f32[8,128], index: 3, kind: output, shape index: {}]
  %s4 = sld [smem:[#allocation0]]
  $region34: #{tpu_custom_call.1} parent=0
    _
  %s6 = ssub.s32 1, %s4
  %s7 = scalar_select 0, %s6, %s4
  $region1: #{tpu_custom_call.1} parent=0
    #allocation2 [shape = 'u8[4096]{0}', space=vmem, size = 0x1000, scoped, tag = 'input window, operand 0, single buffered']
    #allocation3 [shape = 's32[1]{0}', space=sflag, size = 0x4, scoped, tag = 'scoped memory for tpu_custom_call.1']
    #allocation4 [shape = 's32[1]{0}', space=sflag, size = 0x4, scoped, tag = 'scoped memory for tpu_custom_call.1']
    #allocation5 [shape = 'u8[262144]{0}', space=vmem, size = 0x40000, scoped, tag = 'input window, operand 1, single buffered']
    #allocation6 [shape = 's32[1]{0}', space=sflag, size = 0x4, scoped, tag = 'scoped memory for tpu_custom_call.1']
    #allocation7 [shape = 'u8[4096]{0}', space=vmem, size = 0x1000, scoped, tag = 'input window, operand 2, single buffered']
    #allocation8 [shape = 'u8[4096]{0}', space=vmem, size = 0x1000, scoped, tag = 'output window, operand 0, single buffered']
    %8 = vsyncpa [#allocation3], 0
    %9 = vsyncpa [#allocation6], 0
    %10 = vsyncpa [#allocation4], 0
    // Predicated region
    $region2: #{tpu_custom_call.1} parent=1 // pred_check
      _
    $region3: #{tpu_custom_call.1} parent=1 // pred_check_branch
      %12 = sbr.rel (0) target = $region5
    $region4: #{tpu_custom_call.1} parent=1 // pred_region
      %s14 = ssub.s32 128, 128
      %15 = vsyncadd [#allocation3], %s14
      %s17 = sshll.u32 [#allocation2], 4
      %s18 = int_to_ptr.vmem [resolvable:$true] %s17
      %20 = dma.hbm_to_vmem [thread:$0]  %s0, 128, %s18, [#allocation3]
    $region5: #{tpu_custom_call.1} parent=1 // pred_fallthru
      _
    // Predicated region
    $region6: #{tpu_custom_call.1} parent=1 // pred_check
      _
    $region7: #{tpu_custom_call.1} parent=1 // pred_check_branch
      %22 = sbr.rel (0) target = $region9
    $region8: #{tpu_custom_call.1} parent=1 // pred_region
      %s24 = ssub.s32 8192, 8192
      %25 = vsyncadd [#allocation6], %s24
      %s26 = sshll.u32 [#allocation5], 4
      %s27 = int_to_ptr.vmem [resolvable:$true] %s26
      %32 = dma.hbm_to_vmem [thread:$0]  %s1, 8192, %s27, [#allocation6], 64, 64, 4
    $region9: #{tpu_custom_call.1} parent=1 // pred_fallthru
      _
    // Predicated region
    $region10: #{tpu_custom_call.1} parent=1 // pred_check
      _
    $region11: #{tpu_custom_call.1} parent=1 // pred_check_branch
      %34 = sbr.rel (0) target = $region13
    $region12: #{tpu_custom_call.1} parent=1 // pred_region
      %s36 = ssub.s32 128, 128
      %37 = vsyncadd [#allocation6], %s36
      %s39 = sshll.u32 [#allocation7], 4
      %s40 = int_to_ptr.vmem [resolvable:$true] %s39
      %42 = dma.hbm_to_vmem [thread:$0]  %s2, 128, %s40, [#allocation6]
    $region13: #{tpu_custom_call.1} parent=1 // pred_fallthru
      _
    // Predicated region
    $region14: #{tpu_custom_call.1} parent=1 // pred_check
      _
    $region15: #{tpu_custom_call.1} parent=1 // pred_check_branch
      %44 = sbr.rel (0) target = $region17
    $region16: #{tpu_custom_call.1} parent=1 // pred_region
      %45 = dma.done [#allocation3], 128
    $region17: #{tpu_custom_call.1} parent=1 // pred_fallthru
      _
    // Predicated region
    $region18: #{tpu_custom_call.1} parent=1 // pred_check
      _
    $region19: #{tpu_custom_call.1} parent=1 // pred_check_branch
      %47 = sbr.rel (0) target = $region21
    $region20: #{tpu_custom_call.1} parent=1 // pred_region
      %48 = dma.done [#allocation6], 8192
    $region21: #{tpu_custom_call.1} parent=1 // pred_fallthru
      _
    // Predicated region
    $region22: #{tpu_custom_call.1} parent=1 // pred_check
      _
    $region23: #{tpu_custom_call.1} parent=1 // pred_check_branch
      %50 = sbr.rel (0) target = $region25
    $region24: #{tpu_custom_call.1} parent=1 // pred_region
      %51 = dma.done [#allocation6], 128
    $region25: #{tpu_custom_call.1} parent=1 // pred_fallthru
      _
    %v53 = vld [vmem:[#allocation2] sm:$0xff]
    %v54 = vmul.f32 %v53, %v53
    %55 = vadd.xlane.f32.xlu0 %v54
    %v56 = vpop.xlane.xlu0 %55
    %v57 = vrcp.pop 128.0
    %v58 = vmul.f32 %v56, %v57
    %v59 = vadd.f32 %v58, 1e-08
    %v60 = vrsqrt.pop %v59
    %v61 = vmul.f32 %v53, %v60
    %v62 = vld [vmem:[#allocation5] sm:$0xf]
    %v63 = vld [vmem:[#allocation5 + $0x4] sm:$0xf]
    %v64 = vld [vmem:[#allocation5 + $0x8] sm:$0xf]
    %v65 = vld [vmem:[#allocation5 + $0xc] sm:$0xf]
    %v66 = vld [vmem:[#allocation5 + $0x10] sm:$0xf]
    %v67 = vld [vmem:[#allocation5 + $0x14] sm:$0xf]
    %v68 = vld [vmem:[#allocation5 + $0x18] sm:$0xf]
    %v69 = vld [vmem:[#allocation5 + $0x1c] sm:$0xf]
    %v70 = vld [vmem:[#allocation5 + $0x20] sm:$0xf]
    %v71 = vld [vmem:[#allocation5 + $0x24] sm:$0xf]
    %v72 = vld [vmem:[#allocation5 + $0x28] sm:$0xf]
    %v73 = vld [vmem:[#allocation5 + $0x2c] sm:$0xf]
    %v74 = vld [vmem:[#allocation5 + $0x30] sm:$0xf]
    %v75 = vld [vmem:[#allocation5 + $0x34] sm:$0xf]
    %v76 = vld [vmem:[#allocation5 + $0x38] sm:$0xf]
    %v77 = vld [vmem:[#allocation5 + $0x3c] sm:$0xf]
    %v78 = vld [vmem:[#allocation7] sm:$0x1]
    %v79 = vpack.c.bf16 %v61, %v61
    %v80 = vlaneseq
    %v81 = vshrl.u32 %v80, 7
    %v82 = vsub.s32 0, %v81
    %v83 = vrot.slane %v78, %v82
    %v100 = vunpack.c.l.b16 %v62
    %v101 = vunpack.c.l.b16 %v63
    %v102 = vunpack.c.l.b16 %v64
    %v103 = vunpack.c.l.b16 %v65
    %v104 = vunpack.c.l.b16 %v66
    %v105 = vunpack.c.l.b16 %v67
    %v106 = vunpack.c.l.b16 %v68
    %v107 = vunpack.c.l.b16 %v69
    %v108 = vunpack.c.l.b16 %v70
    %v109 = vunpack.c.l.b16 %v71
    %v110 = vunpack.c.l.b16 %v72
    %v111 = vunpack.c.l.b16 %v73
    %v112 = vunpack.c.l.b16 %v74
    %v113 = vunpack.c.l.b16 %v75
    %v114 = vunpack.c.l.b16 %v76
    %v115 = vunpack.c.l.b16 %v77
    %v116 = vpack.c.b16 %v101, %v100
    %v117 = vpack.c.b16 %v103, %v102
    %v118 = vpack.c.b16 %v105, %v104
    %v119 = vpack.c.b16 %v107, %v106
    %v120 = vpack.c.b16 %v109, %v108
    %v121 = vpack.c.b16 %v111, %v110
    %v122 = vpack.c.b16 %v113, %v112
    %v123 = vpack.c.b16 %v115, %v114
    %132 = vmatprep.subr.bf16.mxu0 0
    %133 = vmatpush1.bf16.msra.mxu0 %v116
    %134 = vmatprep.subr.bf16.mxu0 0
    %135 = vmatpush1.bf16.msra.mxu0 %v117
    %136 = vmatprep.subr.bf16.mxu0 0
    %137 = vmatpush1.bf16.msra.mxu0 %v118
    %138 = vmatprep.subr.bf16.mxu0 0
    %139 = vmatpush1.bf16.msra.mxu0 %v119
    %140 = vmatprep.subr.bf16.mxu0 0
    %141 = vmatpush1.bf16.msra.mxu0 %v120
    %142 = vmatprep.subr.bf16.mxu0 0
    %143 = vmatpush1.bf16.msra.mxu0 %v121
    %144 = vmatprep.subr.bf16.mxu0 0
    %145 = vmatpush1.bf16.msra.mxu0 %v122
    %146 = vmatprep.subr.bf16.mxu0 0
    %147 = vmatpush1.bf16.msra.mxu0 %v123
    %148 = vmatprep.subr.bf16.mxu0 0
    %149 = vmatpush1.bf16.msra.mxu0 0
    %150 = vmatprep.subr.bf16.mxu0 0
    %151 = vmatpush1.bf16.msra.mxu0 0
    %152 = vmatprep.subr.bf16.mxu0 0
    %153 = vmatpush1.bf16.msra.mxu0 0
    %154 = vmatprep.subr.bf16.mxu0 0
    %155 = vmatpush1.bf16.msra.mxu0 0
    %156 = vmatprep.subr.bf16.mxu0 0
    %157 = vmatpush1.bf16.msra.mxu0 0
    %158 = vmatprep.subr.bf16.mxu0 0
    %159 = vmatpush1.bf16.msra.mxu0 0
    %160 = vmatprep.subr.bf16.mxu0 0
    %161 = vmatpush1.bf16.msra.mxu0 0
    %162 = vmatprep.subr.bf16.mxu0 0
    %163 = vmatpush1.bf16.msra.mxu0 0
    %164 = vmatprep.mubr.bf16.mxu0 0
    %165 = vmatmul.mubr.bf16.gmra.mrb[0].mxu0 %v79
    %v166 = vpop.f32.mrb[0].mxu0
    %v167 = vadd.f32 %v83, %v166
    %v168 = vpop.f32.mrb[0].mxu0
    %v169 = vpop.f32.mrb[0].mxu0
    %v170 = vpop.f32.mrb[0].mxu0
    %171 = vdwg.mxu0
    %v172 = vmul.f32 %v167, 0.2
    %v173 = vmax.f32 %v167, %v172
    %s174 = scalar_lea.vmem [#allocation5], 64
    %v175 = vld [vmem:[%s174] sm:$0xf]
    %v176 = vld [vmem:[%s174 + $0x4] sm:$0xf]
    %v177 = vld [vmem:[%s174 + $0x8] sm:$0xf]
    %v178 = vld [vmem:[%s174 + $0xc] sm:$0xf]
    %v179 = vld [vmem:[%s174 + $0x10] sm:$0xf]
    %v180 = vld [vmem:[%s174 + $0x14] sm:$0xf]
    %v181 = vld [vmem:[%s174 + $0x18] sm:$0xf]
    %v182 = vld [vmem:[%s174 + $0x1c] sm:$0xf]
    %v183 = vld [vmem:[%s174 + $0x20] sm:$0xf]
    %v184 = vld [vmem:[%s174 + $0x24] sm:$0xf]
    %v185 = vld [vmem:[%s174 + $0x28] sm:$0xf]
    %v186 = vld [vmem:[%s174 + $0x2c] sm:$0xf]
    %v187 = vld [vmem:[%s174 + $0x30] sm:$0xf]
    %v188 = vld [vmem:[%s174 + $0x34] sm:$0xf]
    %v189 = vld [vmem:[%s174 + $0x38] sm:$0xf]
    %v190 = vld [vmem:[%s174 + $0x3c] sm:$0xf]
    %v191 = vld [vmem:[#allocation7 + $0x1] sm:$0x1]
    %v192 = vpack.c.bf16 %v173, %v173
    %v193 = vlaneseq
    %v194 = vshrl.u32 %v193, 7
    %v195 = vsub.s32 0, %v194
    %v196 = vrot.slane %v191, %v195
    %v213 = vunpack.c.l.b16 %v175
    %v214 = vunpack.c.l.b16 %v176
    %v215 = vunpack.c.l.b16 %v177
    %v216 = vunpack.c.l.b16 %v178
    %v217 = vunpack.c.l.b16 %v179
    %v218 = vunpack.c.l.b16 %v180
    %v219 = vunpack.c.l.b16 %v181
    %v220 = vunpack.c.l.b16 %v182
    %v221 = vunpack.c.l.b16 %v183
    %v222 = vunpack.c.l.b16 %v184
    %v223 = vunpack.c.l.b16 %v185
    %v224 = vunpack.c.l.b16 %v186
    %v225 = vunpack.c.l.b16 %v187
    %v226 = vunpack.c.l.b16 %v188
    %v227 = vunpack.c.l.b16 %v189
    %v228 = vunpack.c.l.b16 %v190
    %v229 = vpack.c.b16 %v214, %v213
    %v230 = vpack.c.b16 %v216, %v215
    %v231 = vpack.c.b16 %v218, %v217
    %v232 = vpack.c.b16 %v220, %v219
    %v233 = vpack.c.b16 %v222, %v221
    %v234 = vpack.c.b16 %v224, %v223
    %v235 = vpack.c.b16 %v226, %v225
    %v236 = vpack.c.b16 %v228, %v227
    %245 = vmatprep.subr.bf16.mxu0 0
    %246 = vmatpush1.bf16.msra.mxu0 %v229
    %247 = vmatprep.subr.bf16.mxu0 0
    %248 = vmatpush1.bf16.msra.mxu0 %v230
    %249 = vmatprep.subr.bf16.mxu0 0
    %250 = vmatpush1.bf16.msra.mxu0 %v231
    %251 = vmatprep.subr.bf16.mxu0 0
    %252 = vmatpush1.bf16.msra.mxu0 %v232
    %253 = vmatprep.subr.bf16.mxu0 0
    %254 = vmatpush1.bf16.msra.mxu0 %v233
    %255 = vmatprep.subr.bf16.mxu0 0
    %256 = vmatpush1.bf16.msra.mxu0 %v234
    %257 = vmatprep.subr.bf16.mxu0 0
    %258 = vmatpush1.bf16.msra.mxu0 %v235
    %259 = vmatprep.subr.bf16.mxu0 0
    %260 = vmatpush1.bf16.msra.mxu0 %v236
    %261 = vmatprep.subr.bf16.mxu0 0
    %262 = vmatpush1.bf16.msra.mxu0 0
    %263 = vmatprep.subr.bf16.mxu0 0
    %264 = vmatpush1.bf16.msra.mxu0 0
    %265 = vmatprep.subr.bf16.mxu0 0
    %266 = vmatpush1.bf16.msra.mxu0 0
    %267 = vmatprep.subr.bf16.mxu0 0
    %268 = vmatpush1.bf16.msra.mxu0 0
    %269 = vmatprep.subr.bf16.mxu0 0
    %270 = vmatpush1.bf16.msra.mxu0 0
    %271 = vmatprep.subr.bf16.mxu0 0
    %272 = vmatpush1.bf16.msra.mxu0 0
    %273 = vmatprep.subr.bf16.mxu0 0
    %274 = vmatpush1.bf16.msra.mxu0 0
    %275 = vmatprep.subr.bf16.mxu0 0
    %276 = vmatpush1.bf16.msra.mxu0 0
    %277 = vmatprep.mubr.bf16.mxu0 0
    %278 = vmatmul.mubr.bf16.gmra.mrb[0].mxu0 %v192
    %v279 = vpop.f32.mrb[0].mxu0
    %v280 = vadd.f32 %v196, %v279
    %v281 = vpop.f32.mrb[0].mxu0
    %v282 = vpop.f32.mrb[0].mxu0
    %v283 = vpop.f32.mrb[0].mxu0
    %284 = vdwg.mxu0
    %v285 = vmul.f32 %v280, 0.2
    %v286 = vmax.f32 %v280, %v285
    %s287 = scalar_lea.vmem [#allocation5], 128
    %v288 = vld [vmem:[%s287] sm:$0xf]
    %v289 = vld [vmem:[%s287 + $0x4] sm:$0xf]
    %v290 = vld [vmem:[%s287 + $0x8] sm:$0xf]
    %v291 = vld [vmem:[%s287 + $0xc] sm:$0xf]
    %v292 = vld [vmem:[%s287 + $0x10] sm:$0xf]
    %v293 = vld [vmem:[%s287 + $0x14] sm:$0xf]
    %v294 = vld [vmem:[%s287 + $0x18] sm:$0xf]
    %v295 = vld [vmem:[%s287 + $0x1c] sm:$0xf]
    %v296 = vld [vmem:[%s287 + $0x20] sm:$0xf]
    %v297 = vld [vmem:[%s287 + $0x24] sm:$0xf]
    %v298 = vld [vmem:[%s287 + $0x28] sm:$0xf]
    %v299 = vld [vmem:[%s287 + $0x2c] sm:$0xf]
    %v300 = vld [vmem:[%s287 + $0x30] sm:$0xf]
    %v301 = vld [vmem:[%s287 + $0x34] sm:$0xf]
    %v302 = vld [vmem:[%s287 + $0x38] sm:$0xf]
    %v303 = vld [vmem:[%s287 + $0x3c] sm:$0xf]
    %v304 = vld [vmem:[#allocation7 + $0x2] sm:$0x1]
    %v305 = vpack.c.bf16 %v286, %v286
    %v306 = vlaneseq
    %v307 = vshrl.u32 %v306, 7
    %v308 = vsub.s32 0, %v307
    %v309 = vrot.slane %v304, %v308
    %v326 = vunpack.c.l.b16 %v288
    %v327 = vunpack.c.l.b16 %v289
    %v328 = vunpack.c.l.b16 %v290
    %v329 = vunpack.c.l.b16 %v291
    %v330 = vunpack.c.l.b16 %v292
    %v331 = vunpack.c.l.b16 %v293
    %v332 = vunpack.c.l.b16 %v294
    %v333 = vunpack.c.l.b16 %v295
    %v334 = vunpack.c.l.b16 %v296
    %v335 = vunpack.c.l.b16 %v297
    %v336 = vunpack.c.l.b16 %v298
    %v337 = vunpack.c.l.b16 %v299
    %v338 = vunpack.c.l.b16 %v300
    %v339 = vunpack.c.l.b16 %v301
    %v340 = vunpack.c.l.b16 %v302
    %v341 = vunpack.c.l.b16 %v303
    %v342 = vpack.c.b16 %v327, %v326
    %v343 = vpack.c.b16 %v329, %v328
    %v344 = vpack.c.b16 %v331, %v330
    %v345 = vpack.c.b16 %v333, %v332
    %v346 = vpack.c.b16 %v335, %v334
    %v347 = vpack.c.b16 %v337, %v336
    %v348 = vpack.c.b16 %v339, %v338
    %v349 = vpack.c.b16 %v341, %v340
    %358 = vmatprep.subr.bf16.mxu0 0
    %359 = vmatpush1.bf16.msra.mxu0 %v342
    %360 = vmatprep.subr.bf16.mxu0 0
    %361 = vmatpush1.bf16.msra.mxu0 %v343
    %362 = vmatprep.subr.bf16.mxu0 0
    %363 = vmatpush1.bf16.msra.mxu0 %v344
    %364 = vmatprep.subr.bf16.mxu0 0
    %365 = vmatpush1.bf16.msra.mxu0 %v345
    %366 = vmatprep.subr.bf16.mxu0 0
    %367 = vmatpush1.bf16.msra.mxu0 %v346
    %368 = vmatprep.subr.bf16.mxu0 0
    %369 = vmatpush1.bf16.msra.mxu0 %v347
    %370 = vmatprep.subr.bf16.mxu0 0
    %371 = vmatpush1.bf16.msra.mxu0 %v348
    %372 = vmatprep.subr.bf16.mxu0 0
    %373 = vmatpush1.bf16.msra.mxu0 %v349
    %374 = vmatprep.subr.bf16.mxu0 0
    %375 = vmatpush1.bf16.msra.mxu0 0
    %376 = vmatprep.subr.bf16.mxu0 0
    %377 = vmatpush1.bf16.msra.mxu0 0
    %378 = vmatprep.subr.bf16.mxu0 0
    %379 = vmatpush1.bf16.msra.mxu0 0
    %380 = vmatprep.subr.bf16.mxu0 0
    %381 = vmatpush1.bf16.msra.mxu0 0
    %382 = vmatprep.subr.bf16.mxu0 0
    %383 = vmatpush1.bf16.msra.mxu0 0
    %384 = vmatprep.subr.bf16.mxu0 0
    %385 = vmatpush1.bf16.msra.mxu0 0
    %386 = vmatprep.subr.bf16.mxu0 0
    %387 = vmatpush1.bf16.msra.mxu0 0
    %388 = vmatprep.subr.bf16.mxu0 0
    %389 = vmatpush1.bf16.msra.mxu0 0
    %390 = vmatprep.mubr.bf16.mxu0 0
    %391 = vmatmul.mubr.bf16.gmra.mrb[0].mxu0 %v305
    %v392 = vpop.f32.mrb[0].mxu0
    %v393 = vadd.f32 %v309, %v392
    %v394 = vpop.f32.mrb[0].mxu0
    %v395 = vpop.f32.mrb[0].mxu0
    %v396 = vpop.f32.mrb[0].mxu0
    %397 = vdwg.mxu0
    %v398 = vmul.f32 %v393, 0.2
    %v399 = vmax.f32 %v393, %v398
    %s400 = scalar_lea.vmem [#allocation5], 192
    %v401 = vld [vmem:[%s400] sm:$0xf]
    %v402 = vld [vmem:[%s400 + $0x4] sm:$0xf]
    %v403 = vld [vmem:[%s400 + $0x8] sm:$0xf]
    %v404 = vld [vmem:[%s400 + $0xc] sm:$0xf]
    %v405 = vld [vmem:[%s400 + $0x10] sm:$0xf]
    %v406 = vld [vmem:[%s400 + $0x14] sm:$0xf]
    %v407 = vld [vmem:[%s400 + $0x18] sm:$0xf]
    %v408 = vld [vmem:[%s400 + $0x1c] sm:$0xf]
    %v409 = vld [vmem:[%s400 + $0x20] sm:$0xf]
    %v410 = vld [vmem:[%s400 + $0x24] sm:$0xf]
    %v411 = vld [vmem:[%s400 + $0x28] sm:$0xf]
    %v412 = vld [vmem:[%s400 + $0x2c] sm:$0xf]
    %v413 = vld [vmem:[%s400 + $0x30] sm:$0xf]
    %v414 = vld [vmem:[%s400 + $0x34] sm:$0xf]
    %v415 = vld [vmem:[%s400 + $0x38] sm:$0xf]
    %v416 = vld [vmem:[%s400 + $0x3c] sm:$0xf]
    %v417 = vld [vmem:[#allocation7 + $0x3] sm:$0x1]
    %v418 = vpack.c.bf16 %v399, %v399
    %v419 = vlaneseq
    %v420 = vshrl.u32 %v419, 7
    %v421 = vsub.s32 0, %v420
    %v422 = vrot.slane %v417, %v421
    %v439 = vunpack.c.l.b16 %v401
    %v440 = vunpack.c.l.b16 %v402
    %v441 = vunpack.c.l.b16 %v403
    %v442 = vunpack.c.l.b16 %v404
    %v443 = vunpack.c.l.b16 %v405
    %v444 = vunpack.c.l.b16 %v406
    %v445 = vunpack.c.l.b16 %v407
    %v446 = vunpack.c.l.b16 %v408
    %v447 = vunpack.c.l.b16 %v409
    %v448 = vunpack.c.l.b16 %v410
    %v449 = vunpack.c.l.b16 %v411
    %v450 = vunpack.c.l.b16 %v412
    %v451 = vunpack.c.l.b16 %v413
    %v452 = vunpack.c.l.b16 %v414
    %v453 = vunpack.c.l.b16 %v415
    %v454 = vunpack.c.l.b16 %v416
    %v455 = vpack.c.b16 %v440, %v439
    %v456 = vpack.c.b16 %v442, %v441
    %v457 = vpack.c.b16 %v444, %v443
    %v458 = vpack.c.b16 %v446, %v445
    %v459 = vpack.c.b16 %v448, %v447
    %v460 = vpack.c.b16 %v450, %v449
    %v461 = vpack.c.b16 %v452, %v451
    %v462 = vpack.c.b16 %v454, %v453
    %471 = vmatprep.subr.bf16.mxu0 0
    %472 = vmatpush1.bf16.msra.mxu0 %v455
    %473 = vmatprep.subr.bf16.mxu0 0
    %474 = vmatpush1.bf16.msra.mxu0 %v456
    %475 = vmatprep.subr.bf16.mxu0 0
    %476 = vmatpush1.bf16.msra.mxu0 %v457
    %477 = vmatprep.subr.bf16.mxu0 0
    %478 = vmatpush1.bf16.msra.mxu0 %v458
    %479 = vmatprep.subr.bf16.mxu0 0
    %480 = vmatpush1.bf16.msra.mxu0 %v459
    %481 = vmatprep.subr.bf16.mxu0 0
    %482 = vmatpush1.bf16.msra.mxu0 %v460
    %483 = vmatprep.subr.bf16.mxu0 0
    %484 = vmatpush1.bf16.msra.mxu0 %v461
    %485 = vmatprep.subr.bf16.mxu0 0
    %486 = vmatpush1.bf16.msra.mxu0 %v462
    %487 = vmatprep.subr.bf16.mxu0 0
    %488 = vmatpush1.bf16.msra.mxu0 0
    %489 = vmatprep.subr.bf16.mxu0 0
    %490 = vmatpush1.bf16.msra.mxu0 0
    %491 = vmatprep.subr.bf16.mxu0 0
    %492 = vmatpush1.bf16.msra.mxu0 0
    %493 = vmatprep.subr.bf16.mxu0 0
    %494 = vmatpush1.bf16.msra.mxu0 0
    %495 = vmatprep.subr.bf16.mxu0 0
    %496 = vmatpush1.bf16.msra.mxu0 0
    %497 = vmatprep.subr.bf16.mxu0 0
    %498 = vmatpush1.bf16.msra.mxu0 0
    %499 = vmatprep.subr.bf16.mxu0 0
    %500 = vmatpush1.bf16.msra.mxu0 0
    %501 = vmatprep.subr.bf16.mxu0 0
    %502 = vmatpush1.bf16.msra.mxu0 0
    %503 = vmatprep.mubr.bf16.mxu0 0
    %504 = vmatmul.mubr.bf16.gmra.mrb[0].mxu0 %v418
    %v505 = vpop.f32.mrb[0].mxu0
    %v506 = vadd.f32 %v422, %v505
    %v507 = vpop.f32.mrb[0].mxu0
    %v508 = vpop.f32.mrb[0].mxu0
    %v509 = vpop.f32.mrb[0].mxu0
    %510 = vdwg.mxu0
    %v511 = vmul.f32 %v506, 0.2
    %v512 = vmax.f32 %v506, %v511
    %s513 = scalar_lea.vmem [#allocation5], 256
    %v514 = vld [vmem:[%s513] sm:$0xf]
    %v515 = vld [vmem:[%s513 + $0x4] sm:$0xf]
    %v516 = vld [vmem:[%s513 + $0x8] sm:$0xf]
    %v517 = vld [vmem:[%s513 + $0xc] sm:$0xf]
    %v518 = vld [vmem:[%s513 + $0x10] sm:$0xf]
    %v519 = vld [vmem:[%s513 + $0x14] sm:$0xf]
    %v520 = vld [vmem:[%s513 + $0x18] sm:$0xf]
    %v521 = vld [vmem:[%s513 + $0x1c] sm:$0xf]
    %v522 = vld [vmem:[%s513 + $0x20] sm:$0xf]
    %v523 = vld [vmem:[%s513 + $0x24] sm:$0xf]
    %v524 = vld [vmem:[%s513 + $0x28] sm:$0xf]
    %v525 = vld [vmem:[%s513 + $0x2c] sm:$0xf]
    %v526 = vld [vmem:[%s513 + $0x30] sm:$0xf]
    %v527 = vld [vmem:[%s513 + $0x34] sm:$0xf]
    %v528 = vld [vmem:[%s513 + $0x38] sm:$0xf]
    %v529 = vld [vmem:[%s513 + $0x3c] sm:$0xf]
    %v530 = vld [vmem:[#allocation7 + $0x4] sm:$0x1]
    %v531 = vpack.c.bf16 %v512, %v512
    %v532 = vlaneseq
    %v533 = vshrl.u32 %v532, 7
    %v534 = vsub.s32 0, %v533
    %v535 = vrot.slane %v530, %v534
    %v552 = vunpack.c.l.b16 %v514
    %v553 = vunpack.c.l.b16 %v515
    %v554 = vunpack.c.l.b16 %v516
    %v555 = vunpack.c.l.b16 %v517
    %v556 = vunpack.c.l.b16 %v518
    %v557 = vunpack.c.l.b16 %v519
    %v558 = vunpack.c.l.b16 %v520
    %v559 = vunpack.c.l.b16 %v521
    %v560 = vunpack.c.l.b16 %v522
    %v561 = vunpack.c.l.b16 %v523
    %v562 = vunpack.c.l.b16 %v524
    %v563 = vunpack.c.l.b16 %v525
    %v564 = vunpack.c.l.b16 %v526
    %v565 = vunpack.c.l.b16 %v527
    %v566 = vunpack.c.l.b16 %v528
    %v567 = vunpack.c.l.b16 %v529
    %v568 = vpack.c.b16 %v553, %v552
    %v569 = vpack.c.b16 %v555, %v554
    %v570 = vpack.c.b16 %v557, %v556
    %v571 = vpack.c.b16 %v559, %v558
    %v572 = vpack.c.b16 %v561, %v560
    %v573 = vpack.c.b16 %v563, %v562
    %v574 = vpack.c.b16 %v565, %v564
    %v575 = vpack.c.b16 %v567, %v566
    %584 = vmatprep.subr.bf16.mxu0 0
    %585 = vmatpush1.bf16.msra.mxu0 %v568
    %586 = vmatprep.subr.bf16.mxu0 0
    %587 = vmatpush1.bf16.msra.mxu0 %v569
    %588 = vmatprep.subr.bf16.mxu0 0
    %589 = vmatpush1.bf16.msra.mxu0 %v570
    %590 = vmatprep.subr.bf16.mxu0 0
    %591 = vmatpush1.bf16.msra.mxu0 %v571
    %592 = vmatprep.subr.bf16.mxu0 0
    %593 = vmatpush1.bf16.msra.mxu0 %v572
    %594 = vmatprep.subr.bf16.mxu0 0
    %595 = vmatpush1.bf16.msra.mxu0 %v573
    %596 = vmatprep.subr.bf16.mxu0 0
    %597 = vmatpush1.bf16.msra.mxu0 %v574
    %598 = vmatprep.subr.bf16.mxu0 0
    %599 = vmatpush1.bf16.msra.mxu0 %v575
    %600 = vmatprep.subr.bf16.mxu0 0
    %601 = vmatpush1.bf16.msra.mxu0 0
    %602 = vmatprep.subr.bf16.mxu0 0
    %603 = vmatpush1.bf16.msra.mxu0 0
    %604 = vmatprep.subr.bf16.mxu0 0
    %605 = vmatpush1.bf16.msra.mxu0 0
    %606 = vmatprep.subr.bf16.mxu0 0
    %607 = vmatpush1.bf16.msra.mxu0 0
    %608 = vmatprep.subr.bf16.mxu0 0
    %609 = vmatpush1.bf16.msra.mxu0 0
    %610 = vmatprep.subr.bf16.mxu0 0
    %611 = vmatpush1.bf16.msra.mxu0 0
    %612 = vmatprep.subr.bf16.mxu0 0
    %613 = vmatpush1.bf16.msra.mxu0 0
    %614 = vmatprep.subr.bf16.mxu0 0
    %615 = vmatpush1.bf16.msra.mxu0 0
    %616 = vmatprep.mubr.bf16.mxu0 0
    %617 = vmatmul.mubr.bf16.gmra.mrb[0].mxu0 %v531
    %v618 = vpop.f32.mrb[0].mxu0
    %v619 = vadd.f32 %v535, %v618
    %v620 = vpop.f32.mrb[0].mxu0
    %v621 = vpop.f32.mrb[0].mxu0
    %v622 = vpop.f32.mrb[0].mxu0
    %623 = vdwg.mxu0
    %v624 = vmul.f32 %v619, 0.2
    %v625 = vmax.f32 %v619, %v624
    %s626 = scalar_lea.vmem [#allocation5], 320
    %v627 = vld [vmem:[%s626] sm:$0xf]
    %v628 = vld [vmem:[%s626 + $0x4] sm:$0xf]
    %v629 = vld [vmem:[%s626 + $0x8] sm:$0xf]
    %v630 = vld [vmem:[%s626 + $0xc] sm:$0xf]
    %v631 = vld [vmem:[%s626 + $0x10] sm:$0xf]
    %v632 = vld [vmem:[%s626 + $0x14] sm:$0xf]
    %v633 = vld [vmem:[%s626 + $0x18] sm:$0xf]
    %v634 = vld [vmem:[%s626 + $0x1c] sm:$0xf]
    %v635 = vld [vmem:[%s626 + $0x20] sm:$0xf]
    %v636 = vld [vmem:[%s626 + $0x24] sm:$0xf]
    %v637 = vld [vmem:[%s626 + $0x28] sm:$0xf]
    %v638 = vld [vmem:[%s626 + $0x2c] sm:$0xf]
    %v639 = vld [vmem:[%s626 + $0x30] sm:$0xf]
    %v640 = vld [vmem:[%s626 + $0x34] sm:$0xf]
    %v641 = vld [vmem:[%s626 + $0x38] sm:$0xf]
    %v642 = vld [vmem:[%s626 + $0x3c] sm:$0xf]
    %v643 = vld [vmem:[#allocation7 + $0x5] sm:$0x1]
    %v644 = vpack.c.bf16 %v625, %v625
    %v645 = vlaneseq
    %v646 = vshrl.u32 %v645, 7
    %v647 = vsub.s32 0, %v646
    %v648 = vrot.slane %v643, %v647
    %v665 = vunpack.c.l.b16 %v627
    %v666 = vunpack.c.l.b16 %v628
    %v667 = vunpack.c.l.b16 %v629
    %v668 = vunpack.c.l.b16 %v630
    %v669 = vunpack.c.l.b16 %v631
    %v670 = vunpack.c.l.b16 %v632
    %v671 = vunpack.c.l.b16 %v633
    %v672 = vunpack.c.l.b16 %v634
    %v673 = vunpack.c.l.b16 %v635
    %v674 = vunpack.c.l.b16 %v636
    %v675 = vunpack.c.l.b16 %v637
    %v676 = vunpack.c.l.b16 %v638
    %v677 = vunpack.c.l.b16 %v639
    %v678 = vunpack.c.l.b16 %v640
    %v679 = vunpack.c.l.b16 %v641
    %v680 = vunpack.c.l.b16 %v642
    %v681 = vpack.c.b16 %v666, %v665
    %v682 = vpack.c.b16 %v668, %v667
    %v683 = vpack.c.b16 %v670, %v669
    %v684 = vpack.c.b16 %v672, %v671
    %v685 = vpack.c.b16 %v674, %v673
    %v686 = vpack.c.b16 %v676, %v675
    %v687 = vpack.c.b16 %v678, %v677
    %v688 = vpack.c.b16 %v680, %v679
    %697 = vmatprep.subr.bf16.mxu0 0
    %698 = vmatpush1.bf16.msra.mxu0 %v681
    %699 = vmatprep.subr.bf16.mxu0 0
    %700 = vmatpush1.bf16.msra.mxu0 %v682
    %701 = vmatprep.subr.bf16.mxu0 0
    %702 = vmatpush1.bf16.msra.mxu0 %v683
    %703 = vmatprep.subr.bf16.mxu0 0
    %704 = vmatpush1.bf16.msra.mxu0 %v684
    %705 = vmatprep.subr.bf16.mxu0 0
    %706 = vmatpush1.bf16.msra.mxu0 %v685
    %707 = vmatprep.subr.bf16.mxu0 0
    %708 = vmatpush1.bf16.msra.mxu0 %v686
    %709 = vmatprep.subr.bf16.mxu0 0
    %710 = vmatpush1.bf16.msra.mxu0 %v687
    %711 = vmatprep.subr.bf16.mxu0 0
    %712 = vmatpush1.bf16.msra.mxu0 %v688
    %713 = vmatprep.subr.bf16.mxu0 0
    %714 = vmatpush1.bf16.msra.mxu0 0
    %715 = vmatprep.subr.bf16.mxu0 0
    %716 = vmatpush1.bf16.msra.mxu0 0
    %717 = vmatprep.subr.bf16.mxu0 0
    %718 = vmatpush1.bf16.msra.mxu0 0
    %719 = vmatprep.subr.bf16.mxu0 0
    %720 = vmatpush1.bf16.msra.mxu0 0
    %721 = vmatprep.subr.bf16.mxu0 0
    %722 = vmatpush1.bf16.msra.mxu0 0
    %723 = vmatprep.subr.bf16.mxu0 0
    %724 = vmatpush1.bf16.msra.mxu0 0
    %725 = vmatprep.subr.bf16.mxu0 0
    %726 = vmatpush1.bf16.msra.mxu0 0
    %727 = vmatprep.subr.bf16.mxu0 0
    %728 = vmatpush1.bf16.msra.mxu0 0
    %729 = vmatprep.mubr.bf16.mxu0 0
    %730 = vmatmul.mubr.bf16.gmra.mrb[0].mxu0 %v644
    %v731 = vpop.f32.mrb[0].mxu0
    %v732 = vadd.f32 %v648, %v731
    %v733 = vpop.f32.mrb[0].mxu0
    %v734 = vpop.f32.mrb[0].mxu0
    %v735 = vpop.f32.mrb[0].mxu0
    %736 = vdwg.mxu0
    %v737 = vmul.f32 %v732, 0.2
    %v738 = vmax.f32 %v732, %v737
    %s739 = scalar_lea.vmem [#allocation5], 384
    %v740 = vld [vmem:[%s739] sm:$0xf]
    %v741 = vld [vmem:[%s739 + $0x4] sm:$0xf]
    %v742 = vld [vmem:[%s739 + $0x8] sm:$0xf]
    %v743 = vld [vmem:[%s739 + $0xc] sm:$0xf]
    %v744 = vld [vmem:[%s739 + $0x10] sm:$0xf]
    %v745 = vld [vmem:[%s739 + $0x14] sm:$0xf]
    %v746 = vld [vmem:[%s739 + $0x18] sm:$0xf]
    %v747 = vld [vmem:[%s739 + $0x1c] sm:$0xf]
    %v748 = vld [vmem:[%s739 + $0x20] sm:$0xf]
    %v749 = vld [vmem:[%s739 + $0x24] sm:$0xf]
    %v750 = vld [vmem:[%s739 + $0x28] sm:$0xf]
    %v751 = vld [vmem:[%s739 + $0x2c] sm:$0xf]
    %v752 = vld [vmem:[%s739 + $0x30] sm:$0xf]
    %v753 = vld [vmem:[%s739 + $0x34] sm:$0xf]
    %v754 = vld [vmem:[%s739 + $0x38] sm:$0xf]
    %v755 = vld [vmem:[%s739 + $0x3c] sm:$0xf]
    %v756 = vld [vmem:[#allocation7 + $0x6] sm:$0x1]
    %v757 = vpack.c.bf16 %v738, %v738
    %v758 = vlaneseq
    %v759 = vshrl.u32 %v758, 7
    %v760 = vsub.s32 0, %v759
    %v761 = vrot.slane %v756, %v760
    %v778 = vunpack.c.l.b16 %v740
    %v779 = vunpack.c.l.b16 %v741
    %v780 = vunpack.c.l.b16 %v742
    %v781 = vunpack.c.l.b16 %v743
    %v782 = vunpack.c.l.b16 %v744
    %v783 = vunpack.c.l.b16 %v745
    %v784 = vunpack.c.l.b16 %v746
    %v785 = vunpack.c.l.b16 %v747
    %v786 = vunpack.c.l.b16 %v748
    %v787 = vunpack.c.l.b16 %v749
    %v788 = vunpack.c.l.b16 %v750
    %v789 = vunpack.c.l.b16 %v751
    %v790 = vunpack.c.l.b16 %v752
    %v791 = vunpack.c.l.b16 %v753
    %v792 = vunpack.c.l.b16 %v754
    %v793 = vunpack.c.l.b16 %v755
    %v794 = vpack.c.b16 %v779, %v778
    %v795 = vpack.c.b16 %v781, %v780
    %v796 = vpack.c.b16 %v783, %v782
    %v797 = vpack.c.b16 %v785, %v784
    %v798 = vpack.c.b16 %v787, %v786
    %v799 = vpack.c.b16 %v789, %v788
    %v800 = vpack.c.b16 %v791, %v790
    %v801 = vpack.c.b16 %v793, %v792
    %810 = vmatprep.subr.bf16.mxu0 0
    %811 = vmatpush1.bf16.msra.mxu0 %v794
    %812 = vmatprep.subr.bf16.mxu0 0
    %813 = vmatpush1.bf16.msra.mxu0 %v795
    %814 = vmatprep.subr.bf16.mxu0 0
    %815 = vmatpush1.bf16.msra.mxu0 %v796
    %816 = vmatprep.subr.bf16.mxu0 0
    %817 = vmatpush1.bf16.msra.mxu0 %v797
    %818 = vmatprep.subr.bf16.mxu0 0
    %819 = vmatpush1.bf16.msra.mxu0 %v798
    %820 = vmatprep.subr.bf16.mxu0 0
    %821 = vmatpush1.bf16.msra.mxu0 %v799
    %822 = vmatprep.subr.bf16.mxu0 0
    %823 = vmatpush1.bf16.msra.mxu0 %v800
    %824 = vmatprep.subr.bf16.mxu0 0
    %825 = vmatpush1.bf16.msra.mxu0 %v801
    %826 = vmatprep.subr.bf16.mxu0 0
    %827 = vmatpush1.bf16.msra.mxu0 0
    %828 = vmatprep.subr.bf16.mxu0 0
    %829 = vmatpush1.bf16.msra.mxu0 0
    %830 = vmatprep.subr.bf16.mxu0 0
    %831 = vmatpush1.bf16.msra.mxu0 0
    %832 = vmatprep.subr.bf16.mxu0 0
    %833 = vmatpush1.bf16.msra.mxu0 0
    %834 = vmatprep.subr.bf16.mxu0 0
    %835 = vmatpush1.bf16.msra.mxu0 0
    %836 = vmatprep.subr.bf16.mxu0 0
    %837 = vmatpush1.bf16.msra.mxu0 0
    %838 = vmatprep.subr.bf16.mxu0 0
    %839 = vmatpush1.bf16.msra.mxu0 0
    %840 = vmatprep.subr.bf16.mxu0 0
    %841 = vmatpush1.bf16.msra.mxu0 0
    %842 = vmatprep.mubr.bf16.mxu0 0
    %843 = vmatmul.mubr.bf16.gmra.mrb[0].mxu0 %v757
    %v844 = vpop.f32.mrb[0].mxu0
    %v845 = vadd.f32 %v761, %v844
    %v846 = vpop.f32.mrb[0].mxu0
    %v847 = vpop.f32.mrb[0].mxu0
    %v848 = vpop.f32.mrb[0].mxu0
    %849 = vdwg.mxu0
    %v850 = vmul.f32 %v845, 0.2
    %v851 = vmax.f32 %v845, %v850
    %s852 = scalar_lea.vmem [#allocation5], 448
    %v853 = vld [vmem:[%s852] sm:$0xf]
    %v854 = vld [vmem:[%s852 + $0x4] sm:$0xf]
    %v855 = vld [vmem:[%s852 + $0x8] sm:$0xf]
    %v856 = vld [vmem:[%s852 + $0xc] sm:$0xf]
    %v857 = vld [vmem:[%s852 + $0x10] sm:$0xf]
    %v858 = vld [vmem:[%s852 + $0x14] sm:$0xf]
    %v859 = vld [vmem:[%s852 + $0x18] sm:$0xf]
    %v860 = vld [vmem:[%s852 + $0x1c] sm:$0xf]
    %v861 = vld [vmem:[%s852 + $0x20] sm:$0xf]
    %v862 = vld [vmem:[%s852 + $0x24] sm:$0xf]
    %v863 = vld [vmem:[%s852 + $0x28] sm:$0xf]
    %v864 = vld [vmem:[%s852 + $0x2c] sm:$0xf]
    %v865 = vld [vmem:[%s852 + $0x30] sm:$0xf]
    %v866 = vld [vmem:[%s852 + $0x34] sm:$0xf]
    %v867 = vld [vmem:[%s852 + $0x38] sm:$0xf]
    %v868 = vld [vmem:[%s852 + $0x3c] sm:$0xf]
    %v869 = vld [vmem:[#allocation7 + $0x7] sm:$0x1]
    %v870 = vpack.c.bf16 %v851, %v851
    %v871 = vlaneseq
    %v872 = vshrl.u32 %v871, 7
    %v873 = vsub.s32 0, %v872
    %v874 = vrot.slane %v869, %v873
    %v891 = vunpack.c.l.b16 %v853
    %v892 = vunpack.c.l.b16 %v854
    %v893 = vunpack.c.l.b16 %v855
    %v894 = vunpack.c.l.b16 %v856
    %v895 = vunpack.c.l.b16 %v857
    %v896 = vunpack.c.l.b16 %v858
    %v897 = vunpack.c.l.b16 %v859
    %v898 = vunpack.c.l.b16 %v860
    %v899 = vunpack.c.l.b16 %v861
    %v900 = vunpack.c.l.b16 %v862
    %v901 = vunpack.c.l.b16 %v863
    %v902 = vunpack.c.l.b16 %v864
    %v903 = vunpack.c.l.b16 %v865
    %v904 = vunpack.c.l.b16 %v866
    %v905 = vunpack.c.l.b16 %v867
    %v906 = vunpack.c.l.b16 %v868
    %v907 = vpack.c.b16 %v892, %v891
    %v908 = vpack.c.b16 %v894, %v893
    %v909 = vpack.c.b16 %v896, %v895
    %v910 = vpack.c.b16 %v898, %v897
    %v911 = vpack.c.b16 %v900, %v899
    %v912 = vpack.c.b16 %v902, %v901
    %v913 = vpack.c.b16 %v904, %v903
    %v914 = vpack.c.b16 %v906, %v905
    %923 = vmatprep.subr.bf16.mxu0 0
    %924 = vmatpush1.bf16.msra.mxu0 %v907
    %925 = vmatprep.subr.bf16.mxu0 0
    %926 = vmatpush1.bf16.msra.mxu0 %v908
    %927 = vmatprep.subr.bf16.mxu0 0
    %928 = vmatpush1.bf16.msra.mxu0 %v909
    %929 = vmatprep.subr.bf16.mxu0 0
    %930 = vmatpush1.bf16.msra.mxu0 %v910
    %931 = vmatprep.subr.bf16.mxu0 0
    %932 = vmatpush1.bf16.msra.mxu0 %v911
    %933 = vmatprep.subr.bf16.mxu0 0
    %934 = vmatpush1.bf16.msra.mxu0 %v912
    %935 = vmatprep.subr.bf16.mxu0 0
    %936 = vmatpush1.bf16.msra.mxu0 %v913
    %937 = vmatprep.subr.bf16.mxu0 0
    %938 = vmatpush1.bf16.msra.mxu0 %v914
    %939 = vmatprep.subr.bf16.mxu0 0
    %940 = vmatpush1.bf16.msra.mxu0 0
    %941 = vmatprep.subr.bf16.mxu0 0
    %942 = vmatpush1.bf16.msra.mxu0 0
    %943 = vmatprep.subr.bf16.mxu0 0
    %944 = vmatpush1.bf16.msra.mxu0 0
    %945 = vmatprep.subr.bf16.mxu0 0
    %946 = vmatpush1.bf16.msra.mxu0 0
    %947 = vmatprep.subr.bf16.mxu0 0
    %948 = vmatpush1.bf16.msra.mxu0 0
    %949 = vmatprep.subr.bf16.mxu0 0
    %950 = vmatpush1.bf16.msra.mxu0 0
    %951 = vmatprep.subr.bf16.mxu0 0
    %952 = vmatpush1.bf16.msra.mxu0 0
    %953 = vmatprep.subr.bf16.mxu0 0
    %954 = vmatpush1.bf16.msra.mxu0 0
    %955 = vmatprep.mubr.bf16.mxu0 0
    %956 = vmatmul.mubr.bf16.gmra.mrb[0].mxu0 %v870
    %v957 = vpop.f32.mrb[0].mxu0
    %v958 = vadd.f32 %v874, %v957
    %v959 = vpop.f32.mrb[0].mxu0
    %v960 = vpop.f32.mrb[0].mxu0
    %v961 = vpop.f32.mrb[0].mxu0
    %962 = vdwg.mxu0
    %v963 = vmul.f32 %v958, 0.2
    %v964 = vmax.f32 %v958, %v963
    %965 = vst [vmem:[#allocation8] sm:$0xff] %v964
    // Predicated region
    $region26: #{tpu_custom_call.1} parent=1 // pred_check
      _
    $region27: #{tpu_custom_call.1} parent=1 // pred_check_branch
      %967 = sbr.rel (0) target = $region29
    $region28: #{tpu_custom_call.1} parent=1 // pred_region
      %s969 = ssub.s32 128, 128
      %970 = vsyncadd [#allocation4], %s969
      %s972 = sshll.u32 [#allocation8], 4
      %s973 = int_to_ptr.vmem [resolvable:$true] %s972
      %975 = dma.vmem_to_hbm [thread:$0]  %s973, 128, %s3, [#allocation4]
    $region29: #{tpu_custom_call.1} parent=1 // pred_fallthru
      _
    // Predicated region
    $region30: #{tpu_custom_call.1} parent=1 // pred_check
      _
    $region31: #{tpu_custom_call.1} parent=1 // pred_check_branch
      %977 = sbr.rel (0) target = $region33
    $region32: #{tpu_custom_call.1} parent=1 // pred_region
      %978 = dma.done [#allocation4], 128
    $region33: #{tpu_custom_call.1} parent=1 // pred_fallthru
      _
    %979 = vsyncpa [#allocation3], 1
    %980 = vsyncpa [#allocation6], 1
    %981 = vsyncpa [#allocation4], 1

</llo_original>
